<compile_context>
chip_gen: v7x
topology: tpu7x:2x2x1
jax: 0.10.0
libtpu: 0.0.40
codegen_flags: <defaults>
</compile_context>

<pallas_src>
import functools
import math

import jax
import jax.numpy as jnp
from jax.experimental import pallas as pl
from jax.experimental.pallas import tpu as pltpu


# ---------------------------------------------------------------------------
# Glue: transform_size (pure reshape/permute, matches the PyTorch reference)
# ---------------------------------------------------------------------------
def transform_size(x, input_size, output_size):
    # NOTE: the PyTorch reference asserts sizes in {32,64,128,256}; we relax
    # that assertion so the demo can run at small shapes — the reshape
    # semantics are identical.  Dtype preserving (works on bf16).
    if input_size == output_size:
        return x
    n, c = x.shape[0], x.shape[1]
    if output_size > input_size:
        grid = output_size // input_size
        nb = grid * grid
        assert n % nb == 0
        n2 = n // nb
        return (
            x.reshape(n2, grid, grid, c, input_size, input_size)
            .transpose(0, 3, 1, 4, 2, 5)
            .reshape(n2, c, output_size, output_size)
        )
    else:
        grid = input_size // output_size
        assert x.shape[2] == input_size and x.shape[3] == input_size
        return (
            x.reshape(n, c, grid, output_size, grid, output_size)
            .transpose(0, 2, 4, 1, 3, 5)
            .reshape(n * grid * grid, c, output_size, output_size)
        )


# ---------------------------------------------------------------------------
# Chip capability: bf16 VPU/EUP elementwise tail (v6e / v7x yes, v5e no)
# ---------------------------------------------------------------------------
@functools.lru_cache(maxsize=1)
def _bf16_tail_supported():
    try:
        kind = jax.devices()[0].device_kind.lower()
    except Exception:
        return False
    return ("v6" in kind) or ("v7" in kind)


# ---------------------------------------------------------------------------
# Pallas kernel: fused (1x1-conv generator + direct-noise blend)
# Dense (rows, lanes) blocks: rows = B*C tile (sublanes), lanes = HW tile.
# ---------------------------------------------------------------------------
def step_kernel(coef_ref, kx_ref, ks_ref, zb_ref, x_ref, s_ref, o_ref, *, bf16_tail):
    # coef_ref : (2,)  SMEM f32  [ (1-alpha)*beta , alpha*beta ]
    # kx_ref   : (R, R) bf16     block-diag kron(I, w[:C,:].T)   (x half)
    # ks_ref   : (R, R) bf16     block-diag kron(I, w[C:,:].T)   (source half)
    # zb_ref   : (R, 1) f32      per-row conditioning bias (z proj + t emb + b)
    # x_ref    : (R, T) bf16     current x_t block (lane-dense in HW)
    # s_ref    : (R, T) bf16     source_t block
    # o_ref    : (R, T) bf16     new x_t block (aliased with x_t in HBM)
    x = x_ref[...]
    # block-diagonal channel mix on the MXU (f32 accumulation)
    h = jnp.dot(kx_ref[...], x, preferred_element_type=jnp.float32)
    h = h + jnp.dot(ks_ref[...], s_ref[...], preferred_element_type=jnp.float32)
    h = h + zb_ref[...]                                   # f32 bias, lane broadcast
    if bf16_tail:
        # bf16 tanh + blend (v6e / v7x): halves vreg count / VALU+EUP issue.
        y = jnp.tanh(h.astype(jnp.bfloat16))
        c0 = coef_ref[0].astype(jnp.bfloat16)
        c1 = coef_ref[1].astype(jnp.bfloat16)
        o_ref[...] = (c0 * y + c1 * x).astype(o_ref.dtype)
    else:
        # f32 tail (v5e: no bf16 VPU/EUP).
        y = jnp.tanh(h)
        o_ref[...] = (coef_ref[0] * y + coef_ref[1] * x.astype(jnp.float32)).astype(
            o_ref.dtype
        )


# ---------------------------------------------------------------------------
# Tile choosers (VMEM accounting includes sublane padding + f32 intermediates)
# ---------------------------------------------------------------------------
def _choose_row_tile(rows, c, row_cap=256):
    """Row tile: multiple of lcm(C, 8) dividing `rows`, capped; else full."""
    if rows <= row_cap or rows % 8 != 0:
        return rows
    step = (c * 8) // math.gcd(c, 8)
    t = (row_cap // step) * step
    while t >= step:
        if rows % t == 0:
            return t
        t -= step
    return rows


def _choose_hw_tile(hw, row_tile, lane_cap=2048, vmem_budget_bytes=8 * 1024 * 1024):
    """Largest HW tile (multiple of 128, or full extent) under the VMEM budget,
    hard-capped at `lane_cap` lanes (beyond ~1-8K lanes there is <1% to gain,
    and the cap keeps double-buffer headroom on v7x's 64 MiB VMEM)."""
    if hw % 128 != 0:
        return hw  # must take the full (small) extent as one block
    rows_bf16 = -(-row_tile // 16) * 16      # bf16 sublane padding (16)
    rows_f32 = -(-row_tile // 8) * 8         # f32 sublane padding (8)
    # 3 streamed bf16 blocks double-buffered + ~2 f32 intermediates (h, tail)
    per_lane = 3 * 2 * rows_bf16 * 2 + 2 * rows_f32 * 4
    cap = max(128, (vmem_budget_bytes // per_lane) // 128 * 128)
    cap = min(cap, lane_cap)
    tile = min(hw, cap)
    while hw % tile != 0:
        tile -= 128
    return max(tile, 128)


# ---------------------------------------------------------------------------
# One fused reverse-diffusion step at one fractal level
# ---------------------------------------------------------------------------
def fused_step(x_t_nchw, source_t_nchw, w, zb, coef_h, coef_x):
    B, C, H, W = x_t_nchw.shape
    HW = H * W
    R = B * C

    # NCHW -> (B*C, HW): pure contiguous reshape, zero data movement.
    x = x_t_nchw.reshape(R, HW)
    s = source_t_nchw.reshape(R, HW)
    if x.dtype != jnp.bfloat16:
        x = x.astype(jnp.bfloat16)   # only hit on the (tiny) first-step noise
    if s.dtype != jnp.bfloat16:
        s = s.astype(jnp.bfloat16)   # no-op: source is pre-cast once per run

    row_tile = _choose_row_tile(R, C)
    hw_tile = _choose_hw_tile(HW, row_tile)
    n_row = R // row_tile
    n_hw = HW // hw_tile

    # Block-diagonal weights (same for every row block since the per-channel
    # 1x1 conv is shared across samples); precomputed outside the kernel.
    reps = row_tile // C
    eye = jnp.eye(reps, dtype=jnp.bfloat16)
    kx = jnp.kron(eye, w[:C, :].T.astype(jnp.bfloat16))   # (row_tile, row_tile)
    ks = jnp.kron(eye, w[C:, :].T.astype(jnp.bfloat16))   # (row_tile, row_tile)

    zb_col = zb.reshape(R, 1).astype(jnp.float32)          # (B*C, 1)
    coefs = jnp.stack([coef_h, coef_x]).astype(jnp.float32)

    # Put the larger axis first so v7x megacore gets balanced "parallel" work.
    if n_hw >= n_row:
        grid = (n_hw, n_row)
        bidx = lambda a, b: (b, a)      # -> (row_block, hw_block)
    else:
        grid = (n_row, n_hw)
        bidx = lambda a, b: (a, b)

    kernel = functools.partial(step_kernel, bf16_tail=_bf16_tail_supported())

    out = pl.pallas_call(
        kernel,
        out_shape=jax.ShapeDtypeStruct((R, HW), jnp.bfloat16),
        grid=grid,
        in_specs=[
            pl.BlockSpec(memory_space=pltpu.SMEM),                         # coefs
            pl.BlockSpec((row_tile, row_tile), lambda a, b: (0, 0)),       # kx
            pl.BlockSpec((row_tile, row_tile), lambda a, b: (0, 0)),       # ks
            pl.BlockSpec((row_tile, 1), lambda a, b: (bidx(a, b)[0], 0)),  # zb
            pl.BlockSpec((row_tile, hw_tile), lambda a, b: bidx(a, b)),    # x_t
            pl.BlockSpec((row_tile, hw_tile), lambda a, b: bidx(a, b)),    # source_t
        ],
        out_specs=pl.BlockSpec((row_tile, hw_tile), lambda a, b: bidx(a, b)),
        input_output_aliases={4: 0},  # x_t is overwritten in place
        compiler_params=pltpu.CompilerParams(
            dimension_semantics=("parallel", "parallel"),
            vmem_limit_bytes=32 * 1024 * 1024,
        ),
    )(coefs, kx, ks, zb_col, x, s)

    return out.reshape(B, C, H, W)  # still NCHW, still bf16


# ---------------------------------------------------------------------------
# CFDiffusionModel forward (frequency_i=False, padding=False,
# conditional_type='time', sample_fixed=False)
# ---------------------------------------------------------------------------
class Args:
    fractal_num = 2
    fractal_sizes = [16, 8]      # fractal_sizes[t] = spatial size at level t
    z_emb_dim = 32
    frequency_i = False
    padding = False
    conditional_type = "time"
    sample_fixed = False
    test_alpha = [0.3, 0.7]
    test_beta = [0.4, 0.6]


def init_params(args, channels, key):
    """Deterministic parameter init (synthetic checkpoint)."""
    keys = jax.random.split(key, 4 * args.fractal_num)
    params = {
        "alpha": jnp.asarray(args.test_alpha, jnp.float32),   # ndim == 1
        "beta": jnp.asarray(args.test_beta, jnp.float32),
        "models": [],
    }
    for t in range(args.fractal_num):
        k0, k1, k2, k3 = keys[4 * t : 4 * t + 4]
        params["models"].append(
            {
                "w": 0.2 * jax.random.normal(k0, (2 * channels, channels), jnp.float32),
                "b": 0.1 * jax.random.normal(k1, (channels,), jnp.float32),
                "wz": 0.1 * jax.random.normal(k2, (args.z_emb_dim, channels), jnp.float32),
                "temb": 0.1 * jax.random.normal(k3, (channels,), jnp.float32),
            }
        )
    return params


def cf_diffusion_forward(source, params, key, *, args):
    # Cast the big conditioning tensor to bf16 ONCE; every transform_size
    # after this is a dtype-preserving reshape/transpose on bf16, so no extra
    # HBM cast pass happens per level.
    source_bf = source.astype(jnp.bfloat16)

    # source_t at the finest fractal level
    source_t = transform_size(source_bf, args.fractal_sizes[0], args.fractal_sizes[-1])

    key, knoise = jax.random.split(key)
    # x_t is generated and carried in bf16 across levels (acceptable for a
    # generator; keep f32 here if bit-closeness to the f32 reference matters).
    x_t = jax.random.normal(knoise, source_t.shape, jnp.float32).astype(jnp.bfloat16)

    alpha, beta = params["alpha"], params["beta"]

    for t in reversed(range(args.fractal_num)):
        # conditional_type == 'time' -> t_fractal is a constant level index;
        # folded into the per-level time embedding temb[t].
        key, kz = jax.random.split(key)
        latent_z = jax.random.normal(kz, (x_t.shape[0], args.z_emb_dim), jnp.float32)

        m = params["models"][t]
        # per-sample conditioning bias (tiny matmul -> plain JAX glue)
        zb = latent_z @ m["wz"] + m["b"] + m["temb"]          # (B_t, C)

        # get_direct_noise coefficients (alpha.ndim == 1 branch)
        coef_h = (1.0 - alpha[t]) * beta[t]
        coef_x = alpha[t] * beta[t]

        # fused Pallas step: h_t = model(cat(x_t, source_t), t, z); blend
        x_t = fused_step(x_t, source_t, m["w"], zb, coef_h, coef_x)

        if t != 0:
            source_t = transform_size(
                source_bf, args.fractal_sizes[0], args.fractal_sizes[t - 1]
            )
            x_t = transform_size(
                x_t, args.fractal_sizes[t], args.fractal_sizes[t - 1]
            )
    return x_t.astype(jnp.float32)


# TODO(synk): get_wavelet_noise / get_fft_noise paths are never reached with
# frequency_i=False (and self.dwt/self.idwt are undefined in the reference
# module), so they are not implemented.


if __name__ == "__main__":
    args = Args()
    B, C, S = 2, 4, args.fractal_sizes[0]

    root = jax.random.PRNGKey(0)
    kparam, kdata, kfwd = jax.random.split(root, 3)

    params = init_params(args, C, kparam)
    source = jax.random.normal(kdata, (B, C, S, S), jnp.float32)

    fwd = jax.jit(functools.partial(cf_diffusion_forward, args=args))
    out = fwd(source, params, kfwd)
    out = jax.block_until_ready(out)

    assert out.shape == (B, C, S, S), out.shape
    assert jnp.all(jnp.isfinite(out))
    print("KERNEL_OK")
</pallas_src>

<mosaic_0001>
module attributes {stable_mosaic.version = 11 : i64} {
  func.func @step_kernel(%arg0: i32, %arg1: i32, %arg2: memref<2xf32, #tpu.memory_space<smem>>, %arg3: memref<32x32xbf16, #tpu.memory_space<vmem>>, %arg4: memref<32x32xbf16, #tpu.memory_space<vmem>>, %arg5: memref<32x1xf32, #tpu.memory_space<vmem>>, %arg6: memref<32x64xbf16, #tpu.memory_space<vmem>>, %arg7: memref<32x64xbf16, #tpu.memory_space<vmem>>, %arg8: memref<32x64xbf16, #tpu.memory_space<vmem>>) attributes {dimension_semantics = [#tpu.dimension_semantics<parallel>, #tpu.dimension_semantics<parallel>], iteration_bounds = array<i64: 1, 1>, scalar_prefetch = 0 : i64, scratch_operands = 0 : i64, tpu.core_type = #tpu.core_type<tc>, window_params = [{transform_indices = @transform_0, window_bounds = array<i64: 2>}, {pipeline_mode = #tpu.pipeline_mode<synchronous>, transform_indices = @transform_1, window_bounds = array<i64: 32, 32>}, {pipeline_mode = #tpu.pipeline_mode<synchronous>, transform_indices = @transform_2, window_bounds = array<i64: 32, 32>}, {transform_indices = @transform_3, window_bounds = array<i64: 32, 1>}, {transform_indices = @transform_4, window_bounds = array<i64: 32, 64>}, {transform_indices = @transform_5, window_bounds = array<i64: 32, 64>}, {transform_indices = @transform_6, window_bounds = array<i64: 32, 64>}]} {
    %c0 = arith.constant 0 : index
    %c0_0 = arith.constant 0 : index
    %0 = vector.load %arg6[%c0, %c0_0] : memref<32x64xbf16, #tpu.memory_space<vmem>>, vector<32x64xbf16>
    %c0_1 = arith.constant 0 : index
    %c0_2 = arith.constant 0 : index
    %1 = vector.load %arg3[%c0_1, %c0_2] : memref<32x32xbf16, #tpu.memory_space<vmem>>, vector<32x32xbf16>
    %cst = arith.constant dense<0.000000e+00> : vector<32x64xf32>
    %2 = tpu.matmul %1, %0, %cst {dimension_numbers = #tpu.dot_dimension_numbers<[1], [0], [0], [1], [0, 0, 1, 1], [], []>} : vector<32x32xbf16>, vector<32x64xbf16>, vector<32x64xf32> -> vector<32x64xf32>
    %c0_3 = arith.constant 0 : index
    %c0_4 = arith.constant 0 : index
    %3 = vector.load %arg4[%c0_3, %c0_4] : memref<32x32xbf16, #tpu.memory_space<vmem>>, vector<32x32xbf16>
    %c0_5 = arith.constant 0 : index
    %c0_6 = arith.constant 0 : index
    %4 = vector.load %arg7[%c0_5, %c0_6] : memref<32x64xbf16, #tpu.memory_space<vmem>>, vector<32x64xbf16>
    %cst_7 = arith.constant dense<0.000000e+00> : vector<32x64xf32>
    %5 = tpu.matmul %3, %4, %cst_7 {dimension_numbers = #tpu.dot_dimension_numbers<[1], [0], [0], [1], [0, 0, 1, 1], [], []>} : vector<32x32xbf16>, vector<32x64xbf16>, vector<32x64xf32> -> vector<32x64xf32>
    %6 = arith.addf %2, %5 : vector<32x64xf32>
    %c0_8 = arith.constant 0 : index
    %c0_9 = arith.constant 0 : index
    %7 = vector.load %arg5[%c0_8, %c0_9] : memref<32x1xf32, #tpu.memory_space<vmem>>, vector<32x1xf32>
    %8 = vector.broadcast %7 : vector<32x1xf32> to vector<32x64xf32>
    %9 = arith.addf %6, %8 : vector<32x64xf32>
    %10 = math.tanh %9 : vector<32x64xf32>
    %c0_10 = arith.constant 0 : index
    %11 = memref.load %arg2[%c0_10] : memref<2xf32, #tpu.memory_space<smem>>
    %12 = vector.broadcast %11 : f32 to vector<32x64xf32>
    %13 = arith.mulf %12, %10 : vector<32x64xf32>
    %c1 = arith.constant 1 : index
    %14 = memref.load %arg2[%c1] : memref<2xf32, #tpu.memory_space<smem>>
    %15 = arith.extf %0 : vector<32x64xbf16> to vector<32x64xf32>
    %16 = vector.broadcast %14 : f32 to vector<32x64xf32>
    %17 = arith.mulf %16, %15 : vector<32x64xf32>
    %18 = arith.addf %13, %17 : vector<32x64xf32>
    %19 = arith.truncf %18 : vector<32x64xf32> to vector<32x64xbf16>
    %c0_11 = arith.constant 0 : index
    %c0_12 = arith.constant 0 : index
    %20 = vector.load %arg8[%c0_11, %c0_12] : memref<32x64xbf16, #tpu.memory_space<vmem>>, vector<32x64xbf16>
    tpu.vector_store %arg8[%c0_11, %c0_12], %19 {strides = array<i32>} : memref<32x64xbf16, #tpu.memory_space<vmem>>, vector<32x64xbf16>,
    return
  }
  func.func @transform_0(%arg0: i32, %arg1: i32) -> i32 {
    %c0_i32 = arith.constant 0 : i32
    %c0_i32_0 = arith.constant 0 : i32
    return %c0_i32 : i32
  }
  func.func @transform_1(%arg0: i32, %arg1: i32) -> (i32, i32) {
    %c0_i32 = arith.constant 0 : i32
    %c0_i32_0 = arith.constant 0 : i32
    %c0_i32_1 = arith.constant 0 : i32
    return %c0_i32, %c0_i32_0 : i32, i32
  }
  func.func @transform_2(%arg0: i32, %arg1: i32) -> (i32, i32) {
    %c0_i32 = arith.constant 0 : i32
    %c0_i32_0 = arith.constant 0 : i32
    %c0_i32_1 = arith.constant 0 : i32
    return %c0_i32, %c0_i32_0 : i32, i32
  }
  func.func @transform_3(%arg0: i32, %arg1: i32) -> (i32, i32) {
    %c0_i32 = arith.constant 0 : i32
    %c0_i32_0 = arith.constant 0 : i32
    return %arg1, %c0_i32 : i32, i32
  }
  func.func @transform_4(%arg0: i32, %arg1: i32) -> (i32, i32) {
    %c0_i32 = arith.constant 0 : i32
    return %arg1, %arg0 : i32, i32
  }
  func.func @transform_5(%arg0: i32, %arg1: i32) -> (i32, i32) {
    %c0_i32 = arith.constant 0 : i32
    return %arg1, %arg0 : i32, i32
  }
  func.func @transform_6(%arg0: i32, %arg1: i32) -> (i32, i32) {
    %c0_i32 = arith.constant 0 : i32
    return %arg1, %arg0 : i32, i32
  }
}

module attributes {stable_mosaic.version = 11 : i64} {
  func.func @step_kernel(%arg0: i32, %arg1: i32, %arg2: memref<2xf32, #tpu.memory_space<smem>>, %arg3: memref<8x8xbf16, #tpu.memory_space<vmem>>, %arg4: memref<8x8xbf16, #tpu.memory_space<vmem>>, %arg5: memref<8x1xf32, #tpu.memory_space<vmem>>, %arg6: memref<8x256xbf16, #tpu.memory_space<vmem>>, %arg7: memref<8x256xbf16, #tpu.memory_space<vmem>>, %arg8: memref<8x256xbf16, #tpu.memory_space<vmem>>) attributes {dimension_semantics = [#tpu.dimension_semantics<parallel>, #tpu.dimension_semantics<parallel>], iteration_bounds = array<i64: 1, 1>, scalar_prefetch = 0 : i64, scratch_operands = 0 : i64, tpu.core_type = #tpu.core_type<tc>, window_params = [{transform_indices = @transform_0, window_bounds = array<i64: 2>}, {pipeline_mode = #tpu.pipeline_mode<synchronous>, transform_indices = @transform_1, window_bounds = array<i64: 8, 8>}, {pipeline_mode = #tpu.pipeline_mode<synchronous>, transform_indices = @transform_2, window_bounds = array<i64: 8, 8>}, {transform_indices = @transform_3, window_bounds = array<i64: 8, 1>}, {transform_indices = @transform_4, window_bounds = array<i64: 8, 256>}, {transform_indices = @transform_5, window_bounds = array<i64: 8, 256>}, {transform_indices = @transform_6, window_bounds = array<i64: 8, 256>}]} {
    %c0 = arith.constant 0 : index
    %c0_0 = arith.constant 0 : index
    %0 = vector.load %arg6[%c0, %c0_0] : memref<8x256xbf16, #tpu.memory_space<vmem>>, vector<8x256xbf16>
    %c0_1 = arith.constant 0 : index
    %c0_2 = arith.constant 0 : index
    %1 = vector.load %arg3[%c0_1, %c0_2] : memref<8x8xbf16, #tpu.memory_space<vmem>>, vector<8x8xbf16>
    %cst = arith.constant dense<0.000000e+00> : vector<8x256xf32>
    %2 = tpu.matmul %1, %0, %cst {dimension_numbers = #tpu.dot_dimension_numbers<[1], [0], [0], [1], [0, 0, 1, 1], [], []>} : vector<8x8xbf16>, vector<8x256xbf16>, vector<8x256xf32> -> vector<8x256xf32>
    %c0_3 = arith.constant 0 : index
    %c0_4 = arith.constant 0 : index
    %3 = vector.load %arg4[%c0_3, %c0_4] : memref<8x8xbf16, #tpu.memory_space<vmem>>, vector<8x8xbf16>
    %c0_5 = arith.constant 0 : index
    %c0_6 = arith.constant 0 : index
    %4 = vector.load %arg7[%c0_5, %c0_6] : memref<8x256xbf16, #tpu.memory_space<vmem>>, vector<8x256xbf16>
    %cst_7 = arith.constant dense<0.000000e+00> : vector<8x256xf32>
    %5 = tpu.matmul %3, %4, %cst_7 {dimension_numbers = #tpu.dot_dimension_numbers<[1], [0], [0], [1], [0, 0, 1, 1], [], []>} : vector<8x8xbf16>, vector<8x256xbf16>, vector<8x256xf32> -> vector<8x256xf32>
    %6 = arith.addf %2, %5 : vector<8x256xf32>
    %c0_8 = arith.constant 0 : index
    %c0_9 = arith.constant 0 : index
    %7 = vector.load %arg5[%c0_8, %c0_9] : memref<8x1xf32, #tpu.memory_space<vmem>>, vector<8x1xf32>
    %8 = vector.broadcast %7 : vector<8x1xf32> to vector<8x256xf32>
    %9 = arith.addf %6, %8 : vector<8x256xf32>
    %10 = math.tanh %9 : vector<8x256xf32>
    %c0_10 = arith.constant 0 : index
    %11 = memref.load %arg2[%c0_10] : memref<2xf32, #tpu.memory_space<smem>>
    %12 = vector.broadcast %11 : f32 to vector<8x256xf32>
    %13 = arith.mulf %12, %10 : vector<8x256xf32>
    %c1 = arith.constant 1 : index
    %14 = memref.load %arg2[%c1] : memref<2xf32, #tpu.memory_space<smem>>
    %15 = arith.extf %0 : vector<8x256xbf16> to vector<8x256xf32>
    %16 = vector.broadcast %14 : f32 to vector<8x256xf32>
    %17 = arith.mulf %16, %15 : vector<8x256xf32>
    %18 = arith.addf %13, %17 : vector<8x256xf32>
    %19 = arith.truncf %18 : vector<8x256xf32> to vector<8x256xbf16>
    %c0_11 = arith.constant 0 : index
    %c0_12 = arith.constant 0 : index
    %20 = vector.load %arg8[%c0_11, %c0_12] : memref<8x256xbf16, #tpu.memory_space<vmem>>, vector<8x256xbf16>
    tpu.vector_store %arg8[%c0_11, %c0_12], %19 {strides = array<i32>} : memref<8x256xbf16, #tpu.memory_space<vmem>>, vector<8x256xbf16>,
    return
  }
  func.func @transform_0(%arg0: i32, %arg1: i32) -> i32 {
    %c0_i32 = arith.constant 0 : i32
    %c0_i32_0 = arith.constant 0 : i32
    return %c0_i32 : i32
  }
  func.func @transform_1(%arg0: i32, %arg1: i32) -> (i32, i32) {
    %c0_i32 = arith.constant 0 : i32
    %c0_i32_0 = arith.constant 0 : i32
    %c0_i32_1 = arith.constant 0 : i32
    return %c0_i32, %c0_i32_0 : i32, i32
  }
  func.func @transform_2(%arg0: i32, %arg1: i32) -> (i32, i32) {
    %c0_i32 = arith.constant 0 : i32
    %c0_i32_0 = arith.constant 0 : i32
    %c0_i32_1 = arith.constant 0 : i32
    return %c0_i32, %c0_i32_0 : i32, i32
  }
  func.func @transform_3(%arg0: i32, %arg1: i32) -> (i32, i32) {
    %c0_i32 = arith.constant 0 : i32
    %c0_i32_0 = arith.constant 0 : i32
    return %arg1, %c0_i32 : i32, i32
  }
  func.func @transform_4(%arg0: i32, %arg1: i32) -> (i32, i32) {
    %c0_i32 = arith.constant 0 : i32
    return %arg1, %arg0 : i32, i32
  }
  func.func @transform_5(%arg0: i32, %arg1: i32) -> (i32, i32) {
    %c0_i32 = arith.constant 0 : i32
    return %arg1, %arg0 : i32, i32
  }
  func.func @transform_6(%arg0: i32, %arg1: i32) -> (i32, i32) {
    %c0_i32 = arith.constant 0 : i32
    return %arg1, %arg0 : i32, i32
  }
}

</mosaic_0001>

<llo_original>
// kernel: cf_diffusion_forward.2
$region0: #{cf_diffusion_forward.2}
  #allocation0 [shape = 'u32[]', space=smem, size = 0x4, offset = 0x4, fixed_abs, tag = 'smem constant byte address 0x4 - core index']
  #allocation1 [shape = 'u32[144,128]{1,0:T(1,128)}', space=vmem, size = 0x12000, scoped, tag = 'internal scratch']
  %s0 = inlined_call_operand.vmem [shape: f32[2], index: 0, kind: input, shape index: {}]
  %s1 = inlined_call_operand.vmem [shape: bf16[32,32], index: 1, kind: input, shape index: {}]
  %s2 = inlined_call_operand.vmem [shape: bf16[32,32], index: 2, kind: input, shape index: {}]
  %s3 = inlined_call_operand.vmem [shape: f32[32,1], index: 3, kind: input, shape index: {}]
  %s4 = inlined_call_operand.vmem [shape: bf16[32,64], index: 4, kind: input, shape index: {}, may-alias: {4,6}]
  %s5 = inlined_call_operand.vmem [shape: bf16[32,64], index: 5, kind: input, shape index: {}]
  %s6 = inlined_call_operand.vmem [shape: bf16[32,64], index: 6, kind: output, shape index: {}, may-alias: {4,6}]
  %s7 = sld [smem:[#allocation0]]
  $region38: #{cf_diffusion_forward.2} parent=0
    _
  %s9 = ssub.s32 1, %s7
  %s10 = scalar_select 0, %s9, %s7
  $region1: #{cf_diffusion_forward.2} parent=0
    #allocation2 [shape = 'u8[512]{0}', space=smem, size = 0x200, scoped, tag = 'input window, operand 0, single buffered']
    #allocation3 [shape = 's32[1]{0}', space=sflag, size = 0x4, scoped, tag = 'scoped memory for cf_diffusion_forward.2']
    %11 = vsyncpa [#allocation3], 0
    // Predicated region
    $region2: #{cf_diffusion_forward.2} parent=1 // pred_check
      _
    $region3: #{cf_diffusion_forward.2} parent=1 // pred_check_branch
      %13 = sbr.rel (0) target = $region5
    $region4: #{cf_diffusion_forward.2} parent=1 // pred_region
      %s15 = ssub.s32 16, 16
      %16 = vsyncadd [#allocation3], %s15
      %s18 = sshll.u32 %s0, 4
      %s19 = int_to_ptr.vmem [resolvable:$true] %s18
      %21 = dma.vmem_to_smem %s19, 16, [#allocation2], [#allocation3]
    $region5: #{cf_diffusion_forward.2} parent=1 // pred_fallthru
      _
    // Predicated region
    $region6: #{cf_diffusion_forward.2} parent=1 // pred_check
      _
    $region7: #{cf_diffusion_forward.2} parent=1 // pred_check_branch
      %23 = sbr.rel (0) target = $region9
    $region8: #{cf_diffusion_forward.2} parent=1 // pred_region
      _
    $region9: #{cf_diffusion_forward.2} parent=1 // pred_fallthru
      _
    // Predicated region
    $region10: #{cf_diffusion_forward.2} parent=1 // pred_check
      _
    $region11: #{cf_diffusion_forward.2} parent=1 // pred_check_branch
      %25 = sbr.rel (0) target = $region13
    $region12: #{cf_diffusion_forward.2} parent=1 // pred_region
      _
    $region13: #{cf_diffusion_forward.2} parent=1 // pred_fallthru
      _
    // Predicated region
    $region14: #{cf_diffusion_forward.2} parent=1 // pred_check
      _
    $region15: #{cf_diffusion_forward.2} parent=1 // pred_check_branch
      %27 = sbr.rel (0) target = $region17
    $region16: #{cf_diffusion_forward.2} parent=1 // pred_region
      _
    $region17: #{cf_diffusion_forward.2} parent=1 // pred_fallthru
      _
    // Predicated region
    $region18: #{cf_diffusion_forward.2} parent=1 // pred_check
      _
    $region19: #{cf_diffusion_forward.2} parent=1 // pred_check_branch
      %29 = sbr.rel (0) target = $region21
    $region20: #{cf_diffusion_forward.2} parent=1 // pred_region
      _
    $region21: #{cf_diffusion_forward.2} parent=1 // pred_fallthru
      _
    // Predicated region
    $region22: #{cf_diffusion_forward.2} parent=1 // pred_check
      _
    $region23: #{cf_diffusion_forward.2} parent=1 // pred_check_branch
      %31 = sbr.rel (0) target = $region25
    $region24: #{cf_diffusion_forward.2} parent=1 // pred_region
      _
    $region25: #{cf_diffusion_forward.2} parent=1 // pred_fallthru
      _
    // Predicated region
    $region26: #{cf_diffusion_forward.2} parent=1 // pred_check
      _
    $region27: #{cf_diffusion_forward.2} parent=1 // pred_check_branch
      %33 = sbr.rel (0) target = $region29
    $region28: #{cf_diffusion_forward.2} parent=1 // pred_region
      %34 = dma.done [#allocation3], 16
    $region29: #{cf_diffusion_forward.2} parent=1 // pred_fallthru
      _
    %35 = sfence
    %v37 = vld [vmem:[%s4] sm:$0xf]
    %v38 = vld [vmem:[%s4 + $0x4] sm:$0xf]
    %v39 = vld [vmem:[%s4 + $0x8] sm:$0xf]
    %v40 = vld [vmem:[%s4 + $0xc] sm:$0xf]
    %v41 = vld [vmem:[%s1] sm:$0xf]
    %v42 = vld [vmem:[%s1 + $0x4] sm:$0xf]
    %v43 = vld [vmem:[%s1 + $0x8] sm:$0xf]
    %v44 = vld [vmem:[%s1 + $0xc] sm:$0xf]
    %v45 = vld [vmem:[%s2] sm:$0xf]
    %v46 = vld [vmem:[%s2 + $0x4] sm:$0xf]
    %v47 = vld [vmem:[%s2 + $0x8] sm:$0xf]
    %v48 = vld [vmem:[%s2 + $0xc] sm:$0xf]
    %v49 = vld [vmem:[%s5] sm:$0xf]
    %v50 = vld [vmem:[%s5 + $0x4] sm:$0xf]
    %v51 = vld [vmem:[%s5 + $0x8] sm:$0xf]
    %v52 = vld [vmem:[%s5 + $0xc] sm:$0xf]
    %v57 = vunpack.c.l.b16 %v45
    %v58 = vunpack.c.l.b16 %v46
    %v59 = vunpack.c.l.b16 %v47
    %v60 = vunpack.c.l.b16 %v48
    %v61 = vpack.c.b16 %v58, %v57
    %v62 = vpack.c.b16 %v60, %v59
    %v67 = vunpack.c.l.b16 %v49
    %v68 = vunpack.c.l.b16 %v50
    %v69 = vunpack.c.l.b16 %v51
    %v70 = vunpack.c.l.b16 %v52
    %v71 = vpack.c.b16 %v68, %v67
    %v72 = vpack.c.b16 %v70, %v69
    %vm75 = vcmask 261120
    %v77 = vsel %vm75, %v61, 0
    %v80 = vsel %vm75, %v62, 0
    %82 = vmatprep.subr.bf16.mxu0 0
    %83 = vmatpush1.bf16.msra.mxu0 %v71
    %84 = vmatprep.subr.bf16.mxu0 0
    %85 = vmatpush1.bf16.msra.mxu0 %v72
    %86 = vmatprep.subr.bf16.mxu0 0
    %87 = vmatpush1.bf16.msra.mxu0 0
    %88 = vmatprep.subr.bf16.mxu0 0
    %89 = vmatpush1.bf16.msra.mxu0 0
    %90 = vmatprep.subr.bf16.mxu0 0
    %91 = vmatpush1.bf16.msra.mxu0 0
    %92 = vmatprep.subr.bf16.mxu0 0
    %93 = vmatpush1.bf16.msra.mxu0 0
    %94 = vmatprep.subr.bf16.mxu0 0
    %95 = vmatpush1.bf16.msra.mxu0 0
    %96 = vmatprep.subr.bf16.mxu0 0
    %97 = vmatpush1.bf16.msra.mxu0 0
    %98 = vmatprep.subr.bf16.mxu0 0
    %99 = vmatpush1.bf16.msra.mxu0 0
    %100 = vmatprep.subr.bf16.mxu0 0
    %101 = vmatpush1.bf16.msra.mxu0 0
    %102 = vmatprep.subr.bf16.mxu0 0
    %103 = vmatpush1.bf16.msra.mxu0 0
    %104 = vmatprep.subr.bf16.mxu0 0
    %105 = vmatpush1.bf16.msra.mxu0 0
    %106 = vmatprep.subr.bf16.mxu0 0
    %107 = vmatpush1.bf16.msra.mxu0 0
    %108 = vmatprep.subr.bf16.mxu0 0
    %109 = vmatpush1.bf16.msra.mxu0 0
    %110 = vmatprep.subr.bf16.mxu0 0
    %111 = vmatpush1.bf16.msra.mxu0 0
    %112 = vmatprep.subr.bf16.mxu0 0
    %113 = vmatpush1.bf16.msra.mxu0 0
    %114 = vmatprep.mubr.bf16.mxu0 0
    %115 = vmatmul.mubr.bf16.gmra.mrb[0].mxu0 %v77
    %v116 = vpop.f32.mrb[0].mxu0
    %v117 = vadd.f32 0.0, %v116
    %v118 = vpop.f32.mrb[0].mxu0
    %v119 = vpop.f32.mrb[0].mxu0
    %v120 = vadd.f32 0.0, %v119
    %v121 = vpop.f32.mrb[0].mxu0
    %122 = vmatprep.mubr.bf16.mxu0 0
    %123 = vmatmul.mubr.bf16.gmra.mrb[0].mxu0 %v80
    %v124 = vpop.f32.mrb[0].mxu0
    %v125 = vadd.f32 0.0, %v124
    %v126 = vpop.f32.mrb[0].mxu0
    %v127 = vpop.f32.mrb[0].mxu0
    %v128 = vadd.f32 0.0, %v127
    %v129 = vpop.f32.mrb[0].mxu0
    %130 = vdwg.mxu0
    %v135 = vunpack.c.l.b16 %v41
    %v136 = vunpack.c.l.b16 %v42
    %v137 = vunpack.c.l.b16 %v43
    %v138 = vunpack.c.l.b16 %v44
    %v139 = vpack.c.b16 %v136, %v135
    %v140 = vpack.c.b16 %v138, %v137
    %v145 = vunpack.c.l.b16 %v37
    %v146 = vunpack.c.l.b16 %v38
    %v147 = vunpack.c.l.b16 %v39
    %v148 = vunpack.c.l.b16 %v40
    %v149 = vpack.c.b16 %v146, %v145
    %v150 = vpack.c.b16 %v148, %v147
    %v154 = vsel %vm75, %v139, 0
    %v157 = vsel %vm75, %v140, 0
    %159 = vmatprep.subr.bf16.mxu0 0
    %160 = vmatpush1.bf16.msra.mxu0 %v149
    %161 = vmatprep.subr.bf16.mxu0 0
    %162 = vmatpush1.bf16.msra.mxu0 %v150
    %163 = vmatprep.subr.bf16.mxu0 0
    %164 = vmatpush1.bf16.msra.mxu0 0
    %165 = vmatprep.subr.bf16.mxu0 0
    %166 = vmatpush1.bf16.msra.mxu0 0
    %167 = vmatprep.subr.bf16.mxu0 0
    %168 = vmatpush1.bf16.msra.mxu0 0
    %169 = vmatprep.subr.bf16.mxu0 0
    %170 = vmatpush1.bf16.msra.mxu0 0
    %171 = vmatprep.subr.bf16.mxu0 0
    %172 = vmatpush1.bf16.msra.mxu0 0
    %173 = vmatprep.subr.bf16.mxu0 0
    %174 = vmatpush1.bf16.msra.mxu0 0
    %175 = vmatprep.subr.bf16.mxu0 0
    %176 = vmatpush1.bf16.msra.mxu0 0
    %177 = vmatprep.subr.bf16.mxu0 0
    %178 = vmatpush1.bf16.msra.mxu0 0
    %179 = vmatprep.subr.bf16.mxu0 0
    %180 = vmatpush1.bf16.msra.mxu0 0
    %181 = vmatprep.subr.bf16.mxu0 0
    %182 = vmatpush1.bf16.msra.mxu0 0
    %183 = vmatprep.subr.bf16.mxu0 0
    %184 = vmatpush1.bf16.msra.mxu0 0
    %185 = vmatprep.subr.bf16.mxu0 0
    %186 = vmatpush1.bf16.msra.mxu0 0
    %187 = vmatprep.subr.bf16.mxu0 0
    %188 = vmatpush1.bf16.msra.mxu0 0
    %189 = vmatprep.subr.bf16.mxu0 0
    %190 = vmatpush1.bf16.msra.mxu0 0
    %191 = vmatprep.mubr.bf16.mxu0 0
    %192 = vmatmul.mubr.bf16.gmra.mrb[0].mxu0 %v154
    %v193 = vpop.f32.mrb[0].mxu0
    %v194 = vadd.f32 %v117, %v193
    %v195 = vpop.f32.mrb[0].mxu0
    %v196 = vpop.f32.mrb[0].mxu0
    %v197 = vadd.f32 %v120, %v196
    %v198 = vpop.f32.mrb[0].mxu0
    %199 = vmatprep.mubr.bf16.mxu0 0
    %200 = vmatmul.mubr.bf16.gmra.mrb[0].mxu0 %v157
    %v201 = vpop.f32.mrb[0].mxu0
    %v202 = vadd.f32 %v125, %v201
    %v203 = vpop.f32.mrb[0].mxu0
    %v204 = vpop.f32.mrb[0].mxu0
    %v205 = vadd.f32 %v128, %v204
    %v206 = vpop.f32.mrb[0].mxu0
    %207 = vdwg.mxu0
    %v208 = vld [vmem:[%s3] sm:$0xff]
    %v209 = vld [vmem:[%s3 + $0x8] sm:$0xff]
    %v210 = vld [vmem:[%s3 + $0x10] sm:$0xff]
    %v211 = vld [vmem:[%s3 + $0x18] sm:$0xff]
    %213 = vset.pattern.permute.xlu0 0
    %214 = vperm.xlu0 %213, %v208
    %v215 = vpop.permute.xlu0 %214
    %218 = vset.pattern.permute.xlu0 0
    %219 = vperm.xlu0 %218, %v209
    %v220 = vpop.permute.xlu0 %219
    %223 = vset.pattern.permute.xlu0 0
    %224 = vperm.xlu0 %223, %v210
    %v225 = vpop.permute.xlu0 %224
    %228 = vset.pattern.permute.xlu0 0
    %229 = vperm.xlu0 %228, %v211
    %v230 = vpop.permute.xlu0 %229
    %v232 = vadd.f32 %v194, %v215
    %v233 = vadd.f32 %v197, %v220
    %v234 = vadd.f32 %v202, %v225
    %v235 = vadd.f32 %v205, %v230
    %v236 = vtanh.pop %v232
    %v237 = vtanh.pop %v233
    %v238 = vtanh.pop %v234
    %v239 = vtanh.pop %v235
    %s240 = sld [smem:[#allocation2]]
    %v241 = vstv %s240
    %v242 = vmul.f32 %v241, %v236
    %v243 = vmul.f32 %v241, %v237
    %v244 = vmul.f32 %v241, %v238
    %v245 = vmul.f32 %v241, %v239
    %s246 = sld [smem:[#allocation2 + $0x1]]
    %v247 = vunpack.c.l.bf16 %v37
    %v248 = vunpack.c.l.bf16 %v38
    %v249 = vunpack.c.l.bf16 %v39
    %v250 = vunpack.c.l.bf16 %v40
    %v251 = vstv %s246
    %v252 = vmul.f32 %v251, %v247
    %v253 = vmul.f32 %v251, %v248
    %v254 = vmul.f32 %v251, %v249
    %v255 = vmul.f32 %v251, %v250
    %v256 = vadd.f32 %v242, %v252
    %v257 = vadd.f32 %v243, %v253
    %v258 = vadd.f32 %v244, %v254
    %v259 = vadd.f32 %v245, %v255
    %v260 = vpack.c.bf16 %v257, %v256
    %v261 = vpack.c.bf16 %v259, %v258
    %v264 = vunpack.c.l.b16 %v260
    %v265 = vunpack.c.h.b16 %v260
    %v266 = vunpack.c.l.b16 %v261
    %v267 = vunpack.c.h.b16 %v261
    %v268 = vpack.c.b16 %v264, %v264
    %v269 = vpack.c.b16 %v265, %v265
    %v270 = vpack.c.b16 %v266, %v266
    %v271 = vpack.c.b16 %v267, %v267
    %vm276 = vcmask 519168
    %277 = vst.msk [vmem:[%s6] sm:$0xf] %vm276, %v268
    %278 = vst.msk [vmem:[%s6 + $0x4] sm:$0xf] %vm276, %v269
    %279 = vst.msk [vmem:[%s6 + $0x8] sm:$0xf] %vm276, %v270
    %280 = vst.msk [vmem:[%s6 + $0xc] sm:$0xf] %vm276, %v271
    // Predicated region
    $region30: #{cf_diffusion_forward.2} parent=1 // pred_check
      _
    $region31: #{cf_diffusion_forward.2} parent=1 // pred_check_branch
      %282 = sbr.rel (0) target = $region33
    $region32: #{cf_diffusion_forward.2} parent=1 // pred_region
      _
    $region33: #{cf_diffusion_forward.2} parent=1 // pred_fallthru
      _
    // Predicated region
    $region34: #{cf_diffusion_forward.2} parent=1 // pred_check
      _
    $region35: #{cf_diffusion_forward.2} parent=1 // pred_check_branch
      %284 = sbr.rel (0) target = $region37
    $region36: #{cf_diffusion_forward.2} parent=1 // pred_region
      _
    $region37: #{cf_diffusion_forward.2} parent=1 // pred_fallthru
      _
    %285 = vsyncpa [#allocation3], 1

// kernel: cf_diffusion_forward.3
$region0: #{cf_diffusion_forward.3}
  #allocation0 [shape = 'u32[]', space=smem, size = 0x4, offset = 0x4, fixed_abs, tag = 'smem constant byte address 0x4 - core index']
  #allocation1 [shape = 'u32[144,128]{1,0:T(1,128)}', space=vmem, size = 0x12000, scoped, tag = 'internal scratch']
  %s0 = inlined_call_operand.vmem [shape: f32[2], index: 0, kind: input, shape index: {}]
  %s1 = inlined_call_operand.vmem [shape: bf16[8,8], index: 1, kind: input, shape index: {}]
  %s2 = inlined_call_operand.vmem [shape: bf16[8,8], index: 2, kind: input, shape index: {}]
  %s3 = inlined_call_operand.vmem [shape: f32[8,1], index: 3, kind: input, shape index: {}]
  %s4 = inlined_call_operand.vmem [shape: bf16[8,256], index: 4, kind: input, shape index: {}, may-alias: {4,6}]
  %s5 = inlined_call_operand.vmem [shape: bf16[8,256], index: 5, kind: input, shape index: {}]
  %s6 = inlined_call_operand.vmem [shape: bf16[8,256], index: 6, kind: output, shape index: {}, may-alias: {4,6}]
  %s7 = sld [smem:[#allocation0]]
  $region38: #{cf_diffusion_forward.3} parent=0
    _
  %s9 = ssub.s32 1, %s7
  %s10 = scalar_select 0, %s9, %s7
  $region1: #{cf_diffusion_forward.3} parent=0
    #allocation2 [shape = 'u8[512]{0}', space=smem, size = 0x200, scoped, tag = 'input window, operand 0, single buffered']
    #allocation3 [shape = 's32[1]{0}', space=sflag, size = 0x4, scoped, tag = 'scoped memory for cf_diffusion_forward.3']
    %11 = vsyncpa [#allocation3], 0
    // Predicated region
    $region2: #{cf_diffusion_forward.3} parent=1 // pred_check
      _
    $region3: #{cf_diffusion_forward.3} parent=1 // pred_check_branch
      %13 = sbr.rel (0) target = $region5
    $region4: #{cf_diffusion_forward.3} parent=1 // pred_region
      %s15 = ssub.s32 16, 16
      %16 = vsyncadd [#allocation3], %s15
      %s18 = sshll.u32 %s0, 4
      %s19 = int_to_ptr.vmem [resolvable:$true] %s18
      %21 = dma.vmem_to_smem %s19, 16, [#allocation2], [#allocation3]
    $region5: #{cf_diffusion_forward.3} parent=1 // pred_fallthru
      _
    // Predicated region
    $region6: #{cf_diffusion_forward.3} parent=1 // pred_check
      _
    $region7: #{cf_diffusion_forward.3} parent=1 // pred_check_branch
      %23 = sbr.rel (0) target = $region9
    $region8: #{cf_diffusion_forward.3} parent=1 // pred_region
      _
    $region9: #{cf_diffusion_forward.3} parent=1 // pred_fallthru
      _
    // Predicated region
    $region10: #{cf_diffusion_forward.3} parent=1 // pred_check
      _
    $region11: #{cf_diffusion_forward.3} parent=1 // pred_check_branch
      %25 = sbr.rel (0) target = $region13
    $region12: #{cf_diffusion_forward.3} parent=1 // pred_region
      _
    $region13: #{cf_diffusion_forward.3} parent=1 // pred_fallthru
      _
    // Predicated region
    $region14: #{cf_diffusion_forward.3} parent=1 // pred_check
      _
    $region15: #{cf_diffusion_forward.3} parent=1 // pred_check_branch
      %27 = sbr.rel (0) target = $region17
    $region16: #{cf_diffusion_forward.3} parent=1 // pred_region
      _
    $region17: #{cf_diffusion_forward.3} parent=1 // pred_fallthru
      _
    // Predicated region
    $region18: #{cf_diffusion_forward.3} parent=1 // pred_check
      _
    $region19: #{cf_diffusion_forward.3} parent=1 // pred_check_branch
      %29 = sbr.rel (0) target = $region21
    $region20: #{cf_diffusion_forward.3} parent=1 // pred_region
      _
    $region21: #{cf_diffusion_forward.3} parent=1 // pred_fallthru
      _
    // Predicated region
    $region22: #{cf_diffusion_forward.3} parent=1 // pred_check
      _
    $region23: #{cf_diffusion_forward.3} parent=1 // pred_check_branch
      %31 = sbr.rel (0) target = $region25
    $region24: #{cf_diffusion_forward.3} parent=1 // pred_region
      _
    $region25: #{cf_diffusion_forward.3} parent=1 // pred_fallthru
      _
    // Predicated region
    $region26: #{cf_diffusion_forward.3} parent=1 // pred_check
      _
    $region27: #{cf_diffusion_forward.3} parent=1 // pred_check_branch
      %33 = sbr.rel (0) target = $region29
    $region28: #{cf_diffusion_forward.3} parent=1 // pred_region
      %34 = dma.done [#allocation3], 16
    $region29: #{cf_diffusion_forward.3} parent=1 // pred_fallthru
      _
    %35 = sfence
    %v37 = vld [vmem:[%s4] sm:$0xff]
    %v38 = vld [vmem:[%s1] sm:$0xf]
    %v39 = vld [vmem:[%s2] sm:$0xf]
    %v40 = vld [vmem:[%s5] sm:$0xff]
    %v42 = vunpack.c.l.b16 %v40
    %v43 = vunpack.c.h.b16 %v40
    %v44 = vpack.c.b16 %v42, %v42
    %v45 = vpack.c.b16 %v43, %v43
    %vm46 = vcmask 64512
    %v48 = vsel %vm46, %v39, 0
    %vm50 = vcmask 1043456
    %v52 = vsel %vm50, %v44, 0
    %v55 = vsel %vm50, %v45, 0
    %57 = vmatprep.subr.bf16.mxu0 %v55
    %58 = vmatpush1.bf16.msra.mxu0 %v52
    %59 = vmatprep.subr.bf16.mxu0 0
    %60 = vmatpush1.bf16.msra.mxu0 0
    %61 = vmatprep.subr.bf16.mxu0 0
    %62 = vmatpush1.bf16.msra.mxu0 0
    %63 = vmatprep.subr.bf16.mxu0 0
    %64 = vmatpush1.bf16.msra.mxu0 0
    %65 = vmatprep.subr.bf16.mxu0 0
    %66 = vmatpush1.bf16.msra.mxu0 0
    %67 = vmatprep.subr.bf16.mxu0 0
    %68 = vmatpush1.bf16.msra.mxu0 0
    %69 = vmatprep.subr.bf16.mxu0 0
    %70 = vmatpush1.bf16.msra.mxu0 0
    %71 = vmatprep.subr.bf16.mxu0 0
    %72 = vmatpush1.bf16.msra.mxu0 0
    %73 = vmatprep.subr.bf16.mxu0 0
    %74 = vmatpush1.bf16.msra.mxu0 0
    %75 = vmatprep.subr.bf16.mxu0 0
    %76 = vmatpush1.bf16.msra.mxu0 0
    %77 = vmatprep.subr.bf16.mxu0 0
    %78 = vmatpush1.bf16.msra.mxu0 0
    %79 = vmatprep.subr.bf16.mxu0 0
    %80 = vmatpush1.bf16.msra.mxu0 0
    %81 = vmatprep.subr.bf16.mxu0 0
    %82 = vmatpush1.bf16.msra.mxu0 0
    %83 = vmatprep.subr.bf16.mxu0 0
    %84 = vmatpush1.bf16.msra.mxu0 0
    %85 = vmatprep.subr.bf16.mxu0 0
    %86 = vmatpush1.bf16.msra.mxu0 0
    %87 = vmatprep.subr.bf16.mxu0 0
    %88 = vmatpush1.bf16.msra.mxu0 0
    %89 = vmatprep.mubr.bf16.mxu0 0
    %90 = vmatmul.mubr.bf16.gmra.mrb[0].mxu0 %v48
    %v91 = vpop.f32.mrb[0].mxu0
    %v92 = vadd.f32 0.0, %v91
    %v93 = vpop.f32.mrb[0].mxu0
    %v94 = vadd.f32 0.0, %v93
    %v95 = vpop.f32.mrb[0].mxu0
    %v96 = vpop.f32.mrb[0].mxu0
    %97 = vdwg.mxu0
    %v99 = vunpack.c.l.b16 %v37
    %v100 = vunpack.c.h.b16 %v37
    %v101 = vpack.c.b16 %v99, %v99
    %v102 = vpack.c.b16 %v100, %v100
    %v104 = vsel %vm46, %v38, 0
    %v107 = vsel %vm50, %v101, 0
    %v110 = vsel %vm50, %v102, 0
    %112 = vmatprep.subr.bf16.mxu0 %v110
    %113 = vmatpush1.bf16.msra.mxu0 %v107
    %114 = vmatprep.subr.bf16.mxu0 0
    %115 = vmatpush1.bf16.msra.mxu0 0
    %116 = vmatprep.subr.bf16.mxu0 0
    %117 = vmatpush1.bf16.msra.mxu0 0
    %118 = vmatprep.subr.bf16.mxu0 0
    %119 = vmatpush1.bf16.msra.mxu0 0
    %120 = vmatprep.subr.bf16.mxu0 0
    %121 = vmatpush1.bf16.msra.mxu0 0
    %122 = vmatprep.subr.bf16.mxu0 0
    %123 = vmatpush1.bf16.msra.mxu0 0
    %124 = vmatprep.subr.bf16.mxu0 0
    %125 = vmatpush1.bf16.msra.mxu0 0
    %126 = vmatprep.subr.bf16.mxu0 0
    %127 = vmatpush1.bf16.msra.mxu0 0
    %128 = vmatprep.subr.bf16.mxu0 0
    %129 = vmatpush1.bf16.msra.mxu0 0
    %130 = vmatprep.subr.bf16.mxu0 0
    %131 = vmatpush1.bf16.msra.mxu0 0
    %132 = vmatprep.subr.bf16.mxu0 0
    %133 = vmatpush1.bf16.msra.mxu0 0
    %134 = vmatprep.subr.bf16.mxu0 0
    %135 = vmatpush1.bf16.msra.mxu0 0
    %136 = vmatprep.subr.bf16.mxu0 0
    %137 = vmatpush1.bf16.msra.mxu0 0
    %138 = vmatprep.subr.bf16.mxu0 0
    %139 = vmatpush1.bf16.msra.mxu0 0
    %140 = vmatprep.subr.bf16.mxu0 0
    %141 = vmatpush1.bf16.msra.mxu0 0
    %142 = vmatprep.subr.bf16.mxu0 0
    %143 = vmatpush1.bf16.msra.mxu0 0
    %144 = vmatprep.mubr.bf16.mxu0 0
    %145 = vmatmul.mubr.bf16.gmra.mrb[0].mxu0 %v104
    %v146 = vpop.f32.mrb[0].mxu0
    %v147 = vadd.f32 %v92, %v146
    %v148 = vpop.f32.mrb[0].mxu0
    %v149 = vadd.f32 %v94, %v148
    %v150 = vpop.f32.mrb[0].mxu0
    %v151 = vpop.f32.mrb[0].mxu0
    %152 = vdwg.mxu0
    %v153 = vld [vmem:[%s3] sm:$0xff]
    %155 = vset.pattern.permute.xlu0 0
    %156 = vperm.xlu0 %155, %v153
    %v157 = vpop.permute.xlu0 %156
    %v159 = vadd.f32 %v147, %v157
    %v160 = vadd.f32 %v149, %v157
    %v161 = vtanh.pop %v159
    %v162 = vtanh.pop %v160
    %s163 = sld [smem:[#allocation2]]
    %v164 = vstv %s163
    %v165 = vmul.f32 %v164, %v161
    %v166 = vmul.f32 %v164, %v162
    %s167 = sld [smem:[#allocation2 + $0x1]]
    %v168 = vunpack.c.l.bf16 %v37
    %v169 = vunpack.c.h.bf16 %v37
    %v170 = vstv %s167
    %v171 = vmul.f32 %v170, %v168
    %v172 = vmul.f32 %v170, %v169
    %v173 = vadd.f32 %v165, %v171
    %v174 = vadd.f32 %v166, %v172
    %v175 = vpack.c.bf16 %v173, %v173
    %v176 = vpack.c.bf16 %v174, %v174
    %v179 = vunpack.c.l.b16 %v175
    %v180 = vunpack.c.l.b16 %v176
    %v181 = vpack.c.b16 %v180, %v179
    %183 = vst [vmem:[%s6] sm:$0xff] %v181
    // Predicated region
    $region30: #{cf_diffusion_forward.3} parent=1 // pred_check
      _
    $region31: #{cf_diffusion_forward.3} parent=1 // pred_check_branch
      %185 = sbr.rel (0) target = $region33
    $region32: #{cf_diffusion_forward.3} parent=1 // pred_region
      _
    $region33: #{cf_diffusion_forward.3} parent=1 // pred_fallthru
      _
    // Predicated region
    $region34: #{cf_diffusion_forward.3} parent=1 // pred_check
      _
    $region35: #{cf_diffusion_forward.3} parent=1 // pred_check_branch
      %187 = sbr.rel (0) target = $region37
    $region36: #{cf_diffusion_forward.3} parent=1 // pred_region
      _
    $region37: #{cf_diffusion_forward.3} parent=1 // pred_fallthru
      _
    %188 = vsyncpa [#allocation3], 1

</llo_original>
